<compile_context>
chip_gen: v5e
topology: v5e:2x2
jax: 0.10.0
libtpu: 0.0.40
codegen_flags: <defaults>
</compile_context>

<pallas_src>
import functools
import math

import jax
import jax.numpy as jnp
from jax.experimental import pallas as pl
from jax.experimental.pallas import tpu as pltpu

LANE = 128  # TPU lane width


# ---------------------------------------------------------------------------
# In-kernel helpers (fp32 math for LN/softmax, bf16 feeds for the MXU)
# ---------------------------------------------------------------------------

def _layernorm(x, g, b, eps=1e-5):
    mean = jnp.mean(x, axis=-1, keepdims=True)
    var = jnp.mean((x - mean) ** 2, axis=-1, keepdims=True)
    return (x - mean) * jax.lax.rsqrt(var + eps) * g + b


def _mha_heads(q, k, v, num_heads, scale):
    """Per-head scaled-dot-product attention on 2D (S, E) slabs.

    Head split / concat is done with static lane slices; output is the
    lane-dense (Sq, E) concatenation of heads.
    """
    E = q.shape[-1]
    Dh = E // num_heads
    outs = []
    for h in range(num_heads):           # static python loop, unrolled at trace
        lo = h * Dh
        qh = q[:, lo:lo + Dh].astype(jnp.bfloat16)
        kh = k[:, lo:lo + Dh].astype(jnp.bfloat16)
        vh = v[:, lo:lo + Dh].astype(jnp.bfloat16)
        s = jnp.dot(qh, kh.T, preferred_element_type=jnp.float32) * scale
        m = jnp.max(s, axis=-1, keepdims=True)
        p = jnp.exp(s - m)
        denom = jnp.sum(p, axis=-1, keepdims=True)
        attn = p * pl.reciprocal(denom, approx=True)      # EUP, ~free
        outs.append(jnp.dot(attn.astype(jnp.bfloat16), vh,
                            preferred_element_type=jnp.float32))
    return jnp.concatenate(outs, axis=-1)                  # (Sq, E)


# ---------------------------------------------------------------------------
# Fused kernels
# ---------------------------------------------------------------------------

def _cross_attention_kernel(xq_ref, xkv_ref, wq_ref, bq_ref, wkv_ref, bkv_ref,
                            wo_ref, bo_ref, o_ref, *, num_heads):
    """nn.MultiheadAttention(batch_first=True), eval mode, one batch element.

    xq:(Sq,E)  xkv:(Sk,E)  wq:(E,E) bf16  wkv:(E,2E) bf16  wo:(E,E) bf16.
    """
    xq = xq_ref[...]
    xkv = xkv_ref[...]
    E = xq.shape[-1]
    scale = 1.0 / math.sqrt(E // num_heads)

    q = jnp.dot(xq.astype(jnp.bfloat16), wq_ref[...],
                preferred_element_type=jnp.float32) + bq_ref[...]
    kv = jnp.dot(xkv.astype(jnp.bfloat16), wkv_ref[...],
                 preferred_element_type=jnp.float32) + bkv_ref[...]
    k = kv[:, :E]
    v = kv[:, E:]

    attn_out = _mha_heads(q, k, v, num_heads, scale)       # (Sq, E) lane-dense
    out = jnp.dot(attn_out.astype(jnp.bfloat16), wo_ref[...],
                  preferred_element_type=jnp.float32) + bo_ref[...]
    o_ref[...] = out.astype(o_ref.dtype)


def _encoder_layer_kernel(x_ref, wqkv_ref, bqkv_ref, wo_ref, bo_ref,
                          ln1g_ref, ln1b_ref, w1_ref, b1_ref, w2_ref, b2_ref,
                          ln2g_ref, ln2b_ref, o_ref, *, num_heads):
    """Whole nn.TransformerEncoderLayer (post-norm, ReLU FFN, eval) fused.

    One batch element: x:(S,E).  wqkv:(E,3E) bf16, w1:(E,FF) bf16, w2:(FF,E) bf16.
    """
    x = x_ref[...]                                          # (S, E) fp32
    E = x.shape[-1]
    scale = 1.0 / math.sqrt(E // num_heads)

    # --- self-attention block -------------------------------------------------
    qkv = jnp.dot(x.astype(jnp.bfloat16), wqkv_ref[...],
                  preferred_element_type=jnp.float32) + bqkv_ref[...]
    q = qkv[:, :E]
    k = qkv[:, E:2 * E]
    v = qkv[:, 2 * E:]

    attn_out = _mha_heads(q, k, v, num_heads, scale)        # (S, E)
    attn_out = jnp.dot(attn_out.astype(jnp.bfloat16), wo_ref[...],
                       preferred_element_type=jnp.float32) + bo_ref[...]

    x1 = _layernorm(x + attn_out, ln1g_ref[...], ln1b_ref[...])

    # --- feed-forward block (intermediate stays in VMEM/vregs) ----------------
    h = jnp.dot(x1.astype(jnp.bfloat16), w1_ref[...],
                preferred_element_type=jnp.float32) + b1_ref[...]
    h = jnp.maximum(h, 0.0)                                 # ReLU
    y = jnp.dot(h.astype(jnp.bfloat16), w2_ref[...],
                preferred_element_type=jnp.float32) + b2_ref[...]

    x2 = _layernorm(x1 + y, ln2g_ref[...], ln2b_ref[...])
    o_ref[...] = x2.astype(o_ref.dtype)


def _classifier_kernel(x_ref, w_ref, b_ref, o_ref):
    """Final Linear, weight padded to a full 128-lane group."""
    y = jnp.dot(x_ref[...].astype(jnp.bfloat16), w_ref[...],
                preferred_element_type=jnp.float32) + b_ref[...]
    o_ref[...] = y.astype(o_ref.dtype)


# ---------------------------------------------------------------------------
# pallas_call wrappers
# ---------------------------------------------------------------------------

def _const2d(shape):
    return pl.BlockSpec(shape, lambda b: (0, 0))


def pallas_cross_attention(x_q, x_kv, p, num_heads):
    B, Sq, E = x_q.shape
    Sk = x_kv.shape[1]
    kernel = functools.partial(_cross_attention_kernel, num_heads=num_heads)
    return pl.pallas_call(
        kernel,
        out_shape=jax.ShapeDtypeStruct((B, Sq, E), jnp.float32),
        grid=(B,),
        in_specs=[
            pl.BlockSpec((None, Sq, E), lambda b: (b, 0, 0)),
            pl.BlockSpec((None, Sk, E), lambda b: (b, 0, 0)),
            _const2d((E, E)), _const2d((1, E)),
            _const2d((E, 2 * E)), _const2d((1, 2 * E)),
            _const2d((E, E)), _const2d((1, E)),
        ],
        out_specs=pl.BlockSpec((None, Sq, E), lambda b: (b, 0, 0)),
        compiler_params=pltpu.CompilerParams(
            dimension_semantics=("parallel",)),
    )(x_q, x_kv, p["wq"], p["bq"], p["wkv"], p["bkv"], p["wo"], p["bo"])


def pallas_encoder_layer(x, p, num_heads):
    B, S, E = x.shape
    FF = p["w1"].shape[1]
    kernel = functools.partial(_encoder_layer_kernel, num_heads=num_heads)
    return pl.pallas_call(
        kernel,
        out_shape=jax.ShapeDtypeStruct((B, S, E), jnp.float32),
        grid=(B,),
        in_specs=[
            pl.BlockSpec((None, S, E), lambda b: (b, 0, 0)),
            _const2d((E, 3 * E)), _const2d((1, 3 * E)),
            _const2d((E, E)), _const2d((1, E)),
            _const2d((1, E)), _const2d((1, E)),
            _const2d((E, FF)), _const2d((1, FF)),
            _const2d((FF, E)), _const2d((1, E)),
            _const2d((1, E)), _const2d((1, E)),
        ],
        out_specs=pl.BlockSpec((None, S, E), lambda b: (b, 0, 0)),
        compiler_params=pltpu.CompilerParams(
            dimension_semantics=("parallel",)),
    )(x, p["wqkv"], p["bqkv"], p["wo"], p["bo"],
      p["ln1_g"], p["ln1_b"], p["w1"], p["b1"], p["w2"], p["b2"],
      p["ln2_g"], p["ln2_b"])


def pallas_classifier(x, w_pad, b_pad):
    B, E = x.shape
    N = w_pad.shape[1]
    return pl.pallas_call(
        _classifier_kernel,
        out_shape=jax.ShapeDtypeStruct((B, N), jnp.float32),
        grid=(1,),
        in_specs=[
            pl.BlockSpec((B, E), lambda i: (0, 0)),
            pl.BlockSpec((E, N), lambda i: (0, 0)),
            pl.BlockSpec((1, N), lambda i: (0, 0)),
        ],
        out_specs=pl.BlockSpec((B, N), lambda i: (0, 0)),
    )(x, w_pad, b_pad)


# ---------------------------------------------------------------------------
# Forward pass (glue in plain JAX; all math inside Pallas kernels)
# ---------------------------------------------------------------------------

def stock_predictor_forward(params, input_ids, attention_mask, financial_data,
                            num_heads=4, num_labels=3):
    # TODO(synk): pretrained BertModel has no Pallas equivalent here; a
    # deterministic embedding lookup stands in for bert.last_hidden_state
    # (attention_mask only feeds BERT, so it is unused by the stand-in).
    bert_sequence_output = params["bert_emb"][input_ids]          # (B, S, E)

    x = pallas_cross_attention(bert_sequence_output, financial_data,
                               params["cross_attn"], num_heads)

    for layer_p in params["encoder_layers"]:
        x = pallas_encoder_layer(x, layer_p, num_heads)

    cls_token_output = x[:, 0, :]                                 # (B, E)
    logits_padded = pallas_classifier(cls_token_output,
                                      params["cls_w_pad"], params["cls_b_pad"])
    return logits_padded[:, :num_labels]                          # (B, num_labels)


# ---------------------------------------------------------------------------
# Deterministic parameter init (matmul weights stored bf16 for the MXU,
# biases / LayerNorm params fp32)
# ---------------------------------------------------------------------------

def _cross_attn_params(key, E):
    ks = jax.random.split(key, 4)
    s = 0.02
    wq = jax.random.normal(ks[0], (E, E), jnp.float32) * s
    wk = jax.random.normal(ks[1], (E, E), jnp.float32) * s
    wv = jax.random.normal(ks[2], (E, E), jnp.float32) * s
    wo = jax.random.normal(ks[3], (E, E), jnp.float32) * s
    return {
        "wq": wq.astype(jnp.bfloat16),
        "bq": jnp.zeros((1, E), jnp.float32),
        "wkv": jnp.concatenate([wk, wv], axis=1).astype(jnp.bfloat16),
        "bkv": jnp.zeros((1, 2 * E), jnp.float32),
        "wo": wo.astype(jnp.bfloat16),
        "bo": jnp.zeros((1, E), jnp.float32),
    }


def _encoder_layer_params(key, E, ff):
    ks = jax.random.split(key, 6)
    s = 0.02
    wq = jax.random.normal(ks[0], (E, E), jnp.float32) * s
    wk = jax.random.normal(ks[1], (E, E), jnp.float32) * s
    wv = jax.random.normal(ks[2], (E, E), jnp.float32) * s
    wo = jax.random.normal(ks[3], (E, E), jnp.float32) * s
    w1 = jax.random.normal(ks[4], (E, ff), jnp.float32) * s
    w2 = jax.random.normal(ks[5], (ff, E), jnp.float32) * s
    return {
        "wqkv": jnp.concatenate([wq, wk, wv], axis=1).astype(jnp.bfloat16),
        "bqkv": jnp.zeros((1, 3 * E), jnp.float32),
        "wo": wo.astype(jnp.bfloat16),
        "bo": jnp.zeros((1, E), jnp.float32),
        "ln1_g": jnp.ones((1, E), jnp.float32),
        "ln1_b": jnp.zeros((1, E), jnp.float32),
        "w1": w1.astype(jnp.bfloat16),
        "b1": jnp.zeros((1, ff), jnp.float32),
        "w2": w2.astype(jnp.bfloat16),
        "b2": jnp.zeros((1, E), jnp.float32),
        "ln2_g": jnp.ones((1, E), jnp.float32),
        "ln2_b": jnp.zeros((1, E), jnp.float32),
    }


def init_params(key, vocab_size, E, num_labels, num_layers=2):
    ks = jax.random.split(key, 3 + num_layers)
    s = 0.02
    cls_w = jax.random.normal(ks[2 + num_layers], (E, num_labels),
                              jnp.float32) * s
    # Pad classifier to a full lane group (unmasked stores); slice in wrapper.
    n_pad = max(LANE, num_labels)
    cls_w_pad = jnp.zeros((E, n_pad), jnp.float32).at[:, :num_labels].set(cls_w)
    return {
        "bert_emb": jax.random.normal(ks[0], (vocab_size, E), jnp.float32) * s,
        "cross_attn": _cross_attn_params(ks[1], E),
        "encoder_layers": [
            _encoder_layer_params(ks[2 + i], E, 2 * E) for i in range(num_layers)
        ],
        "cls_w_pad": cls_w_pad.astype(jnp.bfloat16),
        "cls_b_pad": jnp.zeros((1, n_pad), jnp.float32),
    }


# ---------------------------------------------------------------------------
# Main
# ---------------------------------------------------------------------------

if __name__ == "__main__":
    # Scaled-down shapes consistent with the module (hidden 768 -> 128,
    # 4 heads, dim_feedforward = 2 * hidden, 2 encoder layers, 3 labels).
    B, S_TEXT, S_FIN = 2, 8, 8
    HIDDEN, NUM_HEADS, NUM_LABELS, VOCAB = 128, 4, 3, 64

    key = jax.random.PRNGKey(0)
    k_ids, k_fin, k_par = jax.random.split(key, 3)

    input_ids = jax.random.randint(k_ids, (B, S_TEXT), 0, VOCAB, dtype=jnp.int32)
    attention_mask = jnp.ones((B, S_TEXT), dtype=jnp.int32)
    financial_data = jax.random.normal(k_fin, (B, S_FIN, HIDDEN), jnp.float32)

    params = init_params(k_par, VOCAB, HIDDEN, NUM_LABELS, num_layers=2)

    logits = stock_predictor_forward(
        params, input_ids, attention_mask, financial_data,
        num_heads=NUM_HEADS, num_labels=NUM_LABELS)
    logits = jax.block_until_ready(logits)

    assert logits.shape == (B, NUM_LABELS), logits.shape
    assert bool(jnp.all(jnp.isfinite(logits)))
    print("KERNEL_OK")
</pallas_src>

<mosaic_0001>
module attributes {stable_mosaic.version = 11 : i64} {
  func.func @_cross_attention_kernel(%arg0: i32, %arg1: memref<1x8x128xf32, #tpu.memory_space<vmem>>, %arg2: memref<1x8x128xf32, #tpu.memory_space<vmem>>, %arg3: memref<128x128xbf16, #tpu.memory_space<vmem>>, %arg4: memref<1x128xf32, #tpu.memory_space<vmem>>, %arg5: memref<128x256xbf16, #tpu.memory_space<vmem>>, %arg6: memref<1x256xf32, #tpu.memory_space<vmem>>, %arg7: memref<128x128xbf16, #tpu.memory_space<vmem>>, %arg8: memref<1x128xf32, #tpu.memory_space<vmem>>, %arg9: memref<1x8x128xf32, #tpu.memory_space<vmem>>) attributes {dimension_semantics = [#tpu.dimension_semantics<parallel>], iteration_bounds = array<i64: 2>, scalar_prefetch = 0 : i64, scratch_operands = 0 : i64, tpu.core_type = #tpu.core_type<tc>, window_params = [{transform_indices = @transform_0, window_bounds = array<i64: 1, 8, 128>}, {transform_indices = @transform_1, window_bounds = array<i64: 1, 8, 128>}, {pipeline_mode = #tpu.pipeline_mode<synchronous>, transform_indices = @transform_2, window_bounds = array<i64: 128, 128>}, {pipeline_mode = #tpu.pipeline_mode<synchronous>, transform_indices = @transform_3, window_bounds = array<i64: 1, 128>}, {pipeline_mode = #tpu.pipeline_mode<synchronous>, transform_indices = @transform_4, window_bounds = array<i64: 128, 256>}, {pipeline_mode = #tpu.pipeline_mode<synchronous>, transform_indices = @transform_5, window_bounds = array<i64: 1, 256>}, {pipeline_mode = #tpu.pipeline_mode<synchronous>, transform_indices = @transform_6, window_bounds = array<i64: 128, 128>}, {pipeline_mode = #tpu.pipeline_mode<synchronous>, transform_indices = @transform_7, window_bounds = array<i64: 1, 128>}, {transform_indices = @transform_8, window_bounds = array<i64: 1, 8, 128>}]} {
    %c0 = arith.constant 0 : index
    %c0_0 = arith.constant 0 : index
    %c0_1 = arith.constant 0 : index
    %0 = vector.load %arg1[%c0, %c0_0, %c0_1] : memref<1x8x128xf32, #tpu.memory_space<vmem>>, vector<1x8x128xf32>
    %1 = vector.shape_cast %0 : vector<1x8x128xf32> to vector<8x128xf32>
    %c0_2 = arith.constant 0 : index
    %c0_3 = arith.constant 0 : index
    %c0_4 = arith.constant 0 : index
    %2 = vector.load %arg2[%c0_2, %c0_3, %c0_4] : memref<1x8x128xf32, #tpu.memory_space<vmem>>, vector<1x8x128xf32>
    %3 = vector.shape_cast %2 : vector<1x8x128xf32> to vector<8x128xf32>
    %4 = arith.truncf %1 : vector<8x128xf32> to vector<8x128xbf16>
    %c0_5 = arith.constant 0 : index
    %c0_6 = arith.constant 0 : index
    %5 = vector.load %arg3[%c0_5, %c0_6] : memref<128x128xbf16, #tpu.memory_space<vmem>>, vector<128x128xbf16>
    %cst = arith.constant dense<0.000000e+00> : vector<8x128xf32>
    %6 = tpu.matmul %4, %5, %cst {dimension_numbers = #tpu.dot_dimension_numbers<[1], [0], [0], [1], [0, 0, 1, 1], [], []>} : vector<8x128xbf16>, vector<128x128xbf16>, vector<8x128xf32> -> vector<8x128xf32>
    %c0_7 = arith.constant 0 : index
    %c0_8 = arith.constant 0 : index
    %7 = vector.load %arg4[%c0_7, %c0_8] : memref<1x128xf32, #tpu.memory_space<vmem>>, vector<1x128xf32>
    %8 = vector.broadcast %7 : vector<1x128xf32> to vector<8x128xf32>
    %9 = arith.addf %6, %8 : vector<8x128xf32>
    %10 = arith.truncf %3 : vector<8x128xf32> to vector<8x128xbf16>
    %c0_9 = arith.constant 0 : index
    %c0_10 = arith.constant 0 : index
    %11 = vector.load %arg5[%c0_9, %c0_10] : memref<128x256xbf16, #tpu.memory_space<vmem>>, vector<128x256xbf16>
    %cst_11 = arith.constant dense<0.000000e+00> : vector<8x256xf32>
    %12 = tpu.matmul %10, %11, %cst_11 {dimension_numbers = #tpu.dot_dimension_numbers<[1], [0], [0], [1], [0, 0, 1, 1], [], []>} : vector<8x128xbf16>, vector<128x256xbf16>, vector<8x256xf32> -> vector<8x256xf32>
    %c0_12 = arith.constant 0 : index
    %c0_13 = arith.constant 0 : index
    %13 = vector.load %arg6[%c0_12, %c0_13] : memref<1x256xf32, #tpu.memory_space<vmem>>, vector<1x256xf32>
    %14 = vector.broadcast %13 : vector<1x256xf32> to vector<8x256xf32>
    %15 = arith.addf %12, %14 : vector<8x256xf32>
    %16 = vector.extract_strided_slice %15 {offsets = [0, 0], sizes = [8, 128], strides = [1, 1]} : vector<8x256xf32> to vector<8x128xf32>
    %17 = vector.extract_strided_slice %15 {offsets = [0, 128], sizes = [8, 128], strides = [1, 1]} : vector<8x256xf32> to vector<8x128xf32>
    %18 = vector.extract_strided_slice %9 {offsets = [0, 0], sizes = [8, 32], strides = [1, 1]} : vector<8x128xf32> to vector<8x32xf32>
    %19 = arith.truncf %18 : vector<8x32xf32> to vector<8x32xbf16>
    %20 = vector.extract_strided_slice %16 {offsets = [0, 0], sizes = [8, 32], strides = [1, 1]} : vector<8x128xf32> to vector<8x32xf32>
    %21 = arith.truncf %20 : vector<8x32xf32> to vector<8x32xbf16>
    %22 = vector.extract_strided_slice %17 {offsets = [0, 0], sizes = [8, 32], strides = [1, 1]} : vector<8x128xf32> to vector<8x32xf32>
    %23 = arith.truncf %22 : vector<8x32xf32> to vector<8x32xbf16>
    %24 = tpu.transpose %21, [1, 0] : vector<8x32xbf16> -> vector<32x8xbf16>
    %cst_14 = arith.constant dense<0.000000e+00> : vector<8x8xf32>
    %25 = tpu.matmul %19, %24, %cst_14 {dimension_numbers = #tpu.dot_dimension_numbers<[1], [0], [0], [1], [0, 0, 1, 1], [], []>} : vector<8x32xbf16>, vector<32x8xbf16>, vector<8x8xf32> -> vector<8x8xf32>
    %cst_15 = arith.constant 0.176776692 : f32
    %26 = vector.broadcast %cst_15 : f32 to vector<8x8xf32>
    %27 = arith.mulf %25, %26 : vector<8x8xf32>
    %cst_16 = arith.constant dense<0xFF800000> : vector<8xf32>
    %28 = vector.multi_reduction <maximumf>, %27, %cst_16 [1] : vector<8x8xf32> to vector<8xf32>
    %29 = vector.shape_cast %28 : vector<8xf32> to vector<8x1xf32>
    %30 = vector.broadcast %29 : vector<8x1xf32> to vector<8x8xf32>
    %31 = arith.subf %27, %30 : vector<8x8xf32>
    %32 = math.exp %31 : vector<8x8xf32>
    %cst_17 = arith.constant dense<0.000000e+00> : vector<8xf32>
    %33 = vector.multi_reduction <add>, %32, %cst_17 [1] : vector<8x8xf32> to vector<8xf32>
    %34 = vector.shape_cast %33 : vector<8xf32> to vector<8x1xf32>
    %35 = tpu.reciprocal %34 {approx = true} : vector<8x1xf32> -> vector<8x1xf32>
    %36 = vector.broadcast %35 : vector<8x1xf32> to vector<8x8xf32>
    %37 = arith.mulf %32, %36 : vector<8x8xf32>
    %38 = arith.truncf %37 : vector<8x8xf32> to vector<8x8xbf16>
    %cst_18 = arith.constant dense<0.000000e+00> : vector<8x32xf32>
    %39 = tpu.matmul %38, %23, %cst_18 {dimension_numbers = #tpu.dot_dimension_numbers<[1], [0], [0], [1], [0, 0, 1, 1], [], []>} : vector<8x8xbf16>, vector<8x32xbf16>, vector<8x32xf32> -> vector<8x32xf32>
    %40 = vector.extract_strided_slice %9 {offsets = [0, 32], sizes = [8, 32], strides = [1, 1]} : vector<8x128xf32> to vector<8x32xf32>
    %41 = arith.truncf %40 : vector<8x32xf32> to vector<8x32xbf16>
    %42 = vector.extract_strided_slice %16 {offsets = [0, 32], sizes = [8, 32], strides = [1, 1]} : vector<8x128xf32> to vector<8x32xf32>
    %43 = arith.truncf %42 : vector<8x32xf32> to vector<8x32xbf16>
    %44 = vector.extract_strided_slice %17 {offsets = [0, 32], sizes = [8, 32], strides = [1, 1]} : vector<8x128xf32> to vector<8x32xf32>
    %45 = arith.truncf %44 : vector<8x32xf32> to vector<8x32xbf16>
    %46 = tpu.transpose %43, [1, 0] : vector<8x32xbf16> -> vector<32x8xbf16>
    %cst_19 = arith.constant dense<0.000000e+00> : vector<8x8xf32>
    %47 = tpu.matmul %41, %46, %cst_19 {dimension_numbers = #tpu.dot_dimension_numbers<[1], [0], [0], [1], [0, 0, 1, 1], [], []>} : vector<8x32xbf16>, vector<32x8xbf16>, vector<8x8xf32> -> vector<8x8xf32>
    %cst_20 = arith.constant 0.176776692 : f32
    %48 = vector.broadcast %cst_20 : f32 to vector<8x8xf32>
    %49 = arith.mulf %47, %48 : vector<8x8xf32>
    %cst_21 = arith.constant dense<0xFF800000> : vector<8xf32>
    %50 = vector.multi_reduction <maximumf>, %49, %cst_21 [1] : vector<8x8xf32> to vector<8xf32>
    %51 = vector.shape_cast %50 : vector<8xf32> to vector<8x1xf32>
    %52 = vector.broadcast %51 : vector<8x1xf32> to vector<8x8xf32>
    %53 = arith.subf %49, %52 : vector<8x8xf32>
    %54 = math.exp %53 : vector<8x8xf32>
    %cst_22 = arith.constant dense<0.000000e+00> : vector<8xf32>
    %55 = vector.multi_reduction <add>, %54, %cst_22 [1] : vector<8x8xf32> to vector<8xf32>
    %56 = vector.shape_cast %55 : vector<8xf32> to vector<8x1xf32>
    %57 = tpu.reciprocal %56 {approx = true} : vector<8x1xf32> -> vector<8x1xf32>
    %58 = vector.broadcast %57 : vector<8x1xf32> to vector<8x8xf32>
    %59 = arith.mulf %54, %58 : vector<8x8xf32>
    %60 = arith.truncf %59 : vector<8x8xf32> to vector<8x8xbf16>
    %cst_23 = arith.constant dense<0.000000e+00> : vector<8x32xf32>
    %61 = tpu.matmul %60, %45, %cst_23 {dimension_numbers = #tpu.dot_dimension_numbers<[1], [0], [0], [1], [0, 0, 1, 1], [], []>} : vector<8x8xbf16>, vector<8x32xbf16>, vector<8x32xf32> -> vector<8x32xf32>
    %62 = vector.extract_strided_slice %9 {offsets = [0, 64], sizes = [8, 32], strides = [1, 1]} : vector<8x128xf32> to vector<8x32xf32>
    %63 = arith.truncf %62 : vector<8x32xf32> to vector<8x32xbf16>
    %64 = vector.extract_strided_slice %16 {offsets = [0, 64], sizes = [8, 32], strides = [1, 1]} : vector<8x128xf32> to vector<8x32xf32>
    %65 = arith.truncf %64 : vector<8x32xf32> to vector<8x32xbf16>
    %66 = vector.extract_strided_slice %17 {offsets = [0, 64], sizes = [8, 32], strides = [1, 1]} : vector<8x128xf32> to vector<8x32xf32>
    %67 = arith.truncf %66 : vector<8x32xf32> to vector<8x32xbf16>
    %68 = tpu.transpose %65, [1, 0] : vector<8x32xbf16> -> vector<32x8xbf16>
    %cst_24 = arith.constant dense<0.000000e+00> : vector<8x8xf32>
    %69 = tpu.matmul %63, %68, %cst_24 {dimension_numbers = #tpu.dot_dimension_numbers<[1], [0], [0], [1], [0, 0, 1, 1], [], []>} : vector<8x32xbf16>, vector<32x8xbf16>, vector<8x8xf32> -> vector<8x8xf32>
    %cst_25 = arith.constant 0.176776692 : f32
    %70 = vector.broadcast %cst_25 : f32 to vector<8x8xf32>
    %71 = arith.mulf %69, %70 : vector<8x8xf32>
    %cst_26 = arith.constant dense<0xFF800000> : vector<8xf32>
    %72 = vector.multi_reduction <maximumf>, %71, %cst_26 [1] : vector<8x8xf32> to vector<8xf32>
    %73 = vector.shape_cast %72 : vector<8xf32> to vector<8x1xf32>
    %74 = vector.broadcast %73 : vector<8x1xf32> to vector<8x8xf32>
    %75 = arith.subf %71, %74 : vector<8x8xf32>
    %76 = math.exp %75 : vector<8x8xf32>
    %cst_27 = arith.constant dense<0.000000e+00> : vector<8xf32>
    %77 = vector.multi_reduction <add>, %76, %cst_27 [1] : vector<8x8xf32> to vector<8xf32>
    %78 = vector.shape_cast %77 : vector<8xf32> to vector<8x1xf32>
    %79 = tpu.reciprocal %78 {approx = true} : vector<8x1xf32> -> vector<8x1xf32>
    %80 = vector.broadcast %79 : vector<8x1xf32> to vector<8x8xf32>
    %81 = arith.mulf %76, %80 : vector<8x8xf32>
    %82 = arith.truncf %81 : vector<8x8xf32> to vector<8x8xbf16>
    %cst_28 = arith.constant dense<0.000000e+00> : vector<8x32xf32>
    %83 = tpu.matmul %82, %67, %cst_28 {dimension_numbers = #tpu.dot_dimension_numbers<[1], [0], [0], [1], [0, 0, 1, 1], [], []>} : vector<8x8xbf16>, vector<8x32xbf16>, vector<8x32xf32> -> vector<8x32xf32>
    %84 = vector.extract_strided_slice %9 {offsets = [0, 96], sizes = [8, 32], strides = [1, 1]} : vector<8x128xf32> to vector<8x32xf32>
    %85 = arith.truncf %84 : vector<8x32xf32> to vector<8x32xbf16>
    %86 = vector.extract_strided_slice %16 {offsets = [0, 96], sizes = [8, 32], strides = [1, 1]} : vector<8x128xf32> to vector<8x32xf32>
    %87 = arith.truncf %86 : vector<8x32xf32> to vector<8x32xbf16>
    %88 = vector.extract_strided_slice %17 {offsets = [0, 96], sizes = [8, 32], strides = [1, 1]} : vector<8x128xf32> to vector<8x32xf32>
    %89 = arith.truncf %88 : vector<8x32xf32> to vector<8x32xbf16>
    %90 = tpu.transpose %87, [1, 0] : vector<8x32xbf16> -> vector<32x8xbf16>
    %cst_29 = arith.constant dense<0.000000e+00> : vector<8x8xf32>
    %91 = tpu.matmul %85, %90, %cst_29 {dimension_numbers = #tpu.dot_dimension_numbers<[1], [0], [0], [1], [0, 0, 1, 1], [], []>} : vector<8x32xbf16>, vector<32x8xbf16>, vector<8x8xf32> -> vector<8x8xf32>
    %cst_30 = arith.constant 0.176776692 : f32
    %92 = vector.broadcast %cst_30 : f32 to vector<8x8xf32>
    %93 = arith.mulf %91, %92 : vector<8x8xf32>
    %cst_31 = arith.constant dense<0xFF800000> : vector<8xf32>
    %94 = vector.multi_reduction <maximumf>, %93, %cst_31 [1] : vector<8x8xf32> to vector<8xf32>
    %95 = vector.shape_cast %94 : vector<8xf32> to vector<8x1xf32>
    %96 = vector.broadcast %95 : vector<8x1xf32> to vector<8x8xf32>
    %97 = arith.subf %93, %96 : vector<8x8xf32>
    %98 = math.exp %97 : vector<8x8xf32>
    %cst_32 = arith.constant dense<0.000000e+00> : vector<8xf32>
    %99 = vector.multi_reduction <add>, %98, %cst_32 [1] : vector<8x8xf32> to vector<8xf32>
    %100 = vector.shape_cast %99 : vector<8xf32> to vector<8x1xf32>
    %101 = tpu.reciprocal %100 {approx = true} : vector<8x1xf32> -> vector<8x1xf32>
    %102 = vector.broadcast %101 : vector<8x1xf32> to vector<8x8xf32>
    %103 = arith.mulf %98, %102 : vector<8x8xf32>
    %104 = arith.truncf %103 : vector<8x8xf32> to vector<8x8xbf16>
    %cst_33 = arith.constant dense<0.000000e+00> : vector<8x32xf32>
    %105 = tpu.matmul %104, %89, %cst_33 {dimension_numbers = #tpu.dot_dimension_numbers<[1], [0], [0], [1], [0, 0, 1, 1], [], []>} : vector<8x8xbf16>, vector<8x32xbf16>, vector<8x32xf32> -> vector<8x32xf32>
    %106 = tpu.concatenate %39, %61, %83, %105 in 1 : vector<8x32xf32>, vector<8x32xf32>, vector<8x32xf32>, vector<8x32xf32> -> vector<8x128xf32>
    %107 = arith.truncf %106 : vector<8x128xf32> to vector<8x128xbf16>
    %c0_34 = arith.constant 0 : index
    %c0_35 = arith.constant 0 : index
    %108 = vector.load %arg7[%c0_34, %c0_35] : memref<128x128xbf16, #tpu.memory_space<vmem>>, vector<128x128xbf16>
    %cst_36 = arith.constant dense<0.000000e+00> : vector<8x128xf32>
    %109 = tpu.matmul %107, %108, %cst_36 {dimension_numbers = #tpu.dot_dimension_numbers<[1], [0], [0], [1], [0, 0, 1, 1], [], []>} : vector<8x128xbf16>, vector<128x128xbf16>, vector<8x128xf32> -> vector<8x128xf32>
    %c0_37 = arith.constant 0 : index
    %c0_38 = arith.constant 0 : index
    %110 = vector.load %arg8[%c0_37, %c0_38] : memref<1x128xf32, #tpu.memory_space<vmem>>, vector<1x128xf32>
    %111 = vector.broadcast %110 : vector<1x128xf32> to vector<8x128xf32>
    %112 = arith.addf %109, %111 : vector<8x128xf32>
    %c0_39 = arith.constant 0 : index
    %c0_40 = arith.constant 0 : index
    %c0_41 = arith.constant 0 : index
    %113 = vector.load %arg9[%c0_39, %c0_40, %c0_41] : memref<1x8x128xf32, #tpu.memory_space<vmem>>, vector<1x8x128xf32>
    %114 = vector.shape_cast %113 : vector<1x8x128xf32> to vector<8x128xf32>
    %115 = vector.shape_cast %112 : vector<8x128xf32> to vector<1x8x128xf32>
    tpu.vector_store %arg9[%c0_39, %c0_40, %c0_41], %115 {strides = array<i32>} : memref<1x8x128xf32, #tpu.memory_space<vmem>>, vector<1x8x128xf32>,
    return
  }
  func.func @transform_0(%arg0: i32) -> (i32, i32, i32) {
    %c0_i32 = arith.constant 0 : i32
    %c0_i32_0 = arith.constant 0 : i32
    %c0_i32_1 = arith.constant 0 : i32
    return %arg0, %c0_i32, %c0_i32_0 : i32, i32, i32
  }
  func.func @transform_1(%arg0: i32) -> (i32, i32, i32) {
    %c0_i32 = arith.constant 0 : i32
    %c0_i32_0 = arith.constant 0 : i32
    %c0_i32_1 = arith.constant 0 : i32
    return %arg0, %c0_i32, %c0_i32_0 : i32, i32, i32
  }
  func.func @transform_2(%arg0: i32) -> (i32, i32) {
    %c0_i32 = arith.constant 0 : i32
    %c0_i32_0 = arith.constant 0 : i32
    %c0_i32_1 = arith.constant 0 : i32
    return %c0_i32, %c0_i32_0 : i32, i32
  }
  func.func @transform_3(%arg0: i32) -> (i32, i32) {
    %c0_i32 = arith.constant 0 : i32
    %c0_i32_0 = arith.constant 0 : i32
    %c0_i32_1 = arith.constant 0 : i32
    return %c0_i32, %c0_i32_0 : i32, i32
  }
  func.func @transform_4(%arg0: i32) -> (i32, i32) {
    %c0_i32 = arith.constant 0 : i32
    %c0_i32_0 = arith.constant 0 : i32
    %c0_i32_1 = arith.constant 0 : i32
    return %c0_i32, %c0_i32_0 : i32, i32
  }
  func.func @transform_5(%arg0: i32) -> (i32, i32) {
    %c0_i32 = arith.constant 0 : i32
    %c0_i32_0 = arith.constant 0 : i32
    %c0_i32_1 = arith.constant 0 : i32
    return %c0_i32, %c0_i32_0 : i32, i32
  }
  func.func @transform_6(%arg0: i32) -> (i32, i32) {
    %c0_i32 = arith.constant 0 : i32
    %c0_i32_0 = arith.constant 0 : i32
    %c0_i32_1 = arith.constant 0 : i32
    return %c0_i32, %c0_i32_0 : i32, i32
  }
  func.func @transform_7(%arg0: i32) -> (i32, i32) {
    %c0_i32 = arith.constant 0 : i32
    %c0_i32_0 = arith.constant 0 : i32
    %c0_i32_1 = arith.constant 0 : i32
    return %c0_i32, %c0_i32_0 : i32, i32
  }
  func.func @transform_8(%arg0: i32) -> (i32, i32, i32) {
    %c0_i32 = arith.constant 0 : i32
    %c0_i32_0 = arith.constant 0 : i32
    %c0_i32_1 = arith.constant 0 : i32
    return %arg0, %c0_i32, %c0_i32_0 : i32, i32, i32
  }
}

</mosaic_0001>

<llo_original>
// kernel: tpu_custom_call.1
$region0: #{tpu_custom_call.1}
  #allocation0 [shape = 'u32[]', space=smem, size = 0x4, offset = 0x4, fixed_abs, tag = 'smem constant byte address 0x4 - core index']
  #allocation1 [shape = 'u32[72,128]{1,0:T(1,128)}', space=vmem, size = 0x9000, scoped, tag = 'internal scratch']
  %s0 = inlined_call_operand.hbm [shape: f32[2,8,128], index: 0, kind: input, shape index: {}]
  %s1 = inlined_call_operand.hbm [shape: f32[2,8,128], index: 1, kind: input, shape index: {}]
  %s2 = inlined_call_operand.hbm [shape: bf16[128,128], index: 2, kind: input, shape index: {}]
  %s3 = inlined_call_operand.vmem [shape: f32[1,128], index: 3, kind: input, shape index: {}]
  %s4 = inlined_call_operand.hbm [shape: bf16[128,256], index: 4, kind: input, shape index: {}]
  %s5 = inlined_call_operand.vmem [shape: f32[1,256], index: 5, kind: input, shape index: {}]
  %s6 = inlined_call_operand.hbm [shape: bf16[128,128], index: 6, kind: input, shape index: {}]
  %s7 = inlined_call_operand.vmem [shape: f32[1,128], index: 7, kind: input, shape index: {}]
  %s8 = inlined_call_operand.hbm [shape: f32[2,8,128], index: 8, kind: output, shape index: {}]
  %s9 = sld [smem:[#allocation0]]
  $region85: #{tpu_custom_call.1} parent=0
    _
  %s11 = ssub.s32 1, %s9
  %s12 = scalar_select 0, %s11, %s9
  $region1: #{tpu_custom_call.1} parent=0
    #allocation2 [shape = 'u8[8192]{0}', space=vmem, size = 0x2000, scoped, tag = 'input window, operand 0']
    #allocation3 [shape = 's32[2]{0}', space=sflag, size = 0x8, scoped, tag = 'scoped memory for tpu_custom_call.1']
    #allocation4 [shape = 's32[2]{0}', space=sflag, size = 0x8, scoped, tag = 'scoped memory for tpu_custom_call.1']
    #allocation5 [shape = 'u8[8192]{0}', space=vmem, size = 0x2000, scoped, tag = 'input window, operand 1']
    #allocation6 [shape = 's32[2]{0}', space=sflag, size = 0x8, scoped, tag = 'scoped memory for tpu_custom_call.1']
    #allocation7 [shape = 'u8[32768]{0}', space=vmem, size = 0x8000, scoped, tag = 'input window, operand 2, single buffered']
    #allocation8 [shape = 'u8[65536]{0}', space=vmem, size = 0x10000, scoped, tag = 'input window, operand 4, single buffered']
    #allocation9 [shape = 's32[1]{0}', space=sflag, size = 0x4, scoped, tag = 'scoped memory for tpu_custom_call.1']
    #allocation10 [shape = 'u8[32768]{0}', space=vmem, size = 0x8000, scoped, tag = 'input window, operand 6, single buffered']
    #allocation11 [shape = 'u8[8192]{0}', space=vmem, size = 0x2000, scoped, tag = 'output window, operand 0']
    %13 = vsyncpa [#allocation3], 0
    %s14 = scalar_lea.sflag [#allocation3], 1
    %15 = vsyncpa %s14, 0
    %16 = vsyncpa [#allocation6], 0
    %s17 = scalar_lea.sflag [#allocation6], 1
    %18 = vsyncpa %s17, 0
    %19 = vsyncpa [#allocation9], 0
    %20 = vsyncpa [#allocation4], 0
    %s21 = scalar_lea.sflag [#allocation4], 1
    %22 = vsyncpa %s21, 0
    loop: start=0, step=1, limit=4
    $region2: #{tpu_custom_call.1} parent=1 // loop_pre_header
      _
    $region3: #{tpu_custom_call.1} parent=1 // loop_header
      %s24 = sphi 0, %s28
      %p25 = scmp.ge.s32.totalorder %s24, 4
      %s34 = sphi 0, %s36
      %s37 = sphi 0, %s34
      %s38 = sphi 0, %s37
      %s54 = sphi 0, %s38
      %s60 = sphi 0, %s62
      %s63 = sphi 0, %s60
      %s64 = sphi 0, %s63
      %s80 = sphi 0, %s64
      %s84 = sphi 0, %s84
      %s86 = sphi 0, %s84
      %s87 = sphi 0, %s86
      %s101 = sphi 0, %s87
      %s105 = sphi 0, %s105
      %s107 = sphi 0, %s105
      %s108 = sphi 0, %s107
      %s122 = sphi 0, %s108
      %s126 = sphi 0, %s126
      %s128 = sphi 0, %s126
      %s129 = sphi 0, %s128
      %s143 = sphi 0, %s129
      %s147 = sphi 0, %s147
      %s149 = sphi 0, %s147
      %s150 = sphi 0, %s149
      %s164 = sphi 0, %s150
      %s168 = sphi 0, %s168
      %s170 = sphi 0, %s168
      %s171 = sphi 0, %s170
      %s185 = sphi 0, %s171
      %s189 = sphi 0, %s189
      %s191 = sphi 0, %s189
      %s192 = sphi 0, %s191
      %s206 = sphi 0, %s192
      %s212 = sphi 0, %s214
      %s215 = sphi 0, %s212
      %s216 = sphi 0, %s215
      %s232 = sphi 0, %s216
    $region4: #{tpu_custom_call.1} parent=1 // loop_header_branch
      %27 = sbr.rel (%p25) target = $region8
    $region5: #{tpu_custom_call.1} parent=1 // loop_body
      %s29 = ssub.s32 %s24, 1
      %s30 = ssub.s32 %s24, 2
      %s31 = sadd.s32 %s24, 1
      %s32 = ssub.s32 %s24, %s31
      %p33 = scmp.eq.s32.totalorder %s32, 0
      %s35 = sadd.s32 %s34, 1
      %s36 = scalar_select %p33, %s34, %s35
      %p39 = pneg %p33
      %p40 = scmp.eq.s32.totalorder %s24, 1
      %p41 = por %p39, %p40
      %p42 = scmp.ne.s32.totalorder %s34, %s37
      %p43 = scmp.eq.s32.totalorder %s24, 0
      %p44 = por %p42, %p43
      %p45 = scmp.ne.s32.totalorder %s34, %s37
      %p46 = scmp.eq.s32.totalorder %s29, 1
      %p47 = por %p45, %p46
      %p48 = scmp.ne.s32.totalorder %s37, %s38
      %p49 = scmp.eq.s32.totalorder %s29, 0
      %p50 = por %p48, %p49
      %p51 = scmp.ne.s32.totalorder %s37, %s38
      %p52 = scmp.eq.s32.totalorder %s30, 1
      %p53 = por %p51, %p52
      %p55 = scmp.ne.s32.totalorder %s38, %s54
      %p56 = scmp.eq.s32.totalorder %s30, 0
      %p57 = por %p55, %p56
      %s58 = ssub.s32 %s24, %s31
      %p59 = scmp.eq.s32.totalorder %s58, 0
      %s61 = sadd.s32 %s60, 1
      %s62 = scalar_select %p59, %s60, %s61
      %p65 = pneg %p59
      %p66 = scmp.eq.s32.totalorder %s24, 1
      %p67 = por %p65, %p66
      %p68 = scmp.ne.s32.totalorder %s60, %s63
      %p69 = scmp.eq.s32.totalorder %s24, 0
      %p70 = por %p68, %p69
      %p71 = scmp.ne.s32.totalorder %s60, %s63
      %p72 = scmp.eq.s32.totalorder %s29, 1
      %p73 = por %p71, %p72
      %p74 = scmp.ne.s32.totalorder %s63, %s64
      %p75 = scmp.eq.s32.totalorder %s29, 0
      %p76 = por %p74, %p75
      %p77 = scmp.ne.s32.totalorder %s63, %s64
      %p78 = scmp.eq.s32.totalorder %s30, 1
      %p79 = por %p77, %p78
      %p81 = scmp.ne.s32.totalorder %s64, %s80
      %p82 = scmp.eq.s32.totalorder %s30, 0
      %p83 = por %p81, %p82
      %s85 = sadd.s32 %s84, 1
      %p88 = scmp.eq.s32.totalorder %s24, 1
      %p89 = scmp.ne.s32.totalorder %s84, %s86
      %p90 = scmp.eq.s32.totalorder %s24, 0
      %p91 = por %p89, %p90
      %p92 = scmp.ne.s32.totalorder %s84, %s86
      %p93 = scmp.eq.s32.totalorder %s29, 1
      %p94 = por %p92, %p93
      %p95 = scmp.ne.s32.totalorder %s86, %s87
      %p96 = scmp.eq.s32.totalorder %s29, 0
      %p97 = por %p95, %p96
      %p98 = scmp.ne.s32.totalorder %s86, %s87
      %p99 = scmp.eq.s32.totalorder %s30, 1
      %p100 = por %p98, %p99
      %p102 = scmp.ne.s32.totalorder %s87, %s101
      %p103 = scmp.eq.s32.totalorder %s30, 0
      %p104 = por %p102, %p103
      %s106 = sadd.s32 %s105, 1
      %p109 = scmp.eq.s32.totalorder %s24, 1
      %p110 = scmp.ne.s32.totalorder %s105, %s107
      %p111 = scmp.eq.s32.totalorder %s24, 0
      %p112 = por %p110, %p111
      %p113 = scmp.ne.s32.totalorder %s105, %s107
      %p114 = scmp.eq.s32.totalorder %s29, 1
      %p115 = por %p113, %p114
      %p116 = scmp.ne.s32.totalorder %s107, %s108
      %p117 = scmp.eq.s32.totalorder %s29, 0
      %p118 = por %p116, %p117
      %p119 = scmp.ne.s32.totalorder %s107, %s108
      %p120 = scmp.eq.s32.totalorder %s30, 1
      %p121 = por %p119, %p120
      %p123 = scmp.ne.s32.totalorder %s108, %s122
      %p124 = scmp.eq.s32.totalorder %s30, 0
      %p125 = por %p123, %p124
      %s127 = sadd.s32 %s126, 1
      %p130 = scmp.eq.s32.totalorder %s24, 1
      %p131 = scmp.ne.s32.totalorder %s126, %s128
      %p132 = scmp.eq.s32.totalorder %s24, 0
      %p133 = por %p131, %p132
      %p134 = scmp.ne.s32.totalorder %s126, %s128
      %p135 = scmp.eq.s32.totalorder %s29, 1
      %p136 = por %p134, %p135
      %p137 = scmp.ne.s32.totalorder %s128, %s129
      %p138 = scmp.eq.s32.totalorder %s29, 0
      %p139 = por %p137, %p138
      %p140 = scmp.ne.s32.totalorder %s128, %s129
      %p141 = scmp.eq.s32.totalorder %s30, 1
      %p142 = por %p140, %p141
      %p144 = scmp.ne.s32.totalorder %s129, %s143
      %p145 = scmp.eq.s32.totalorder %s30, 0
      %p146 = por %p144, %p145
      %s148 = sadd.s32 %s147, 1
      %p151 = scmp.eq.s32.totalorder %s24, 1
      %p152 = scmp.ne.s32.totalorder %s147, %s149
      %p153 = scmp.eq.s32.totalorder %s24, 0
      %p154 = por %p152, %p153
      %p155 = scmp.ne.s32.totalorder %s147, %s149
      %p156 = scmp.eq.s32.totalorder %s29, 1
      %p157 = por %p155, %p156
      %p158 = scmp.ne.s32.totalorder %s149, %s150
      %p159 = scmp.eq.s32.totalorder %s29, 0
      %p160 = por %p158, %p159
      %p161 = scmp.ne.s32.totalorder %s149, %s150
      %p162 = scmp.eq.s32.totalorder %s30, 1
      %p163 = por %p161, %p162
      %p165 = scmp.ne.s32.totalorder %s150, %s164
      %p166 = scmp.eq.s32.totalorder %s30, 0
      %p167 = por %p165, %p166
      %s169 = sadd.s32 %s168, 1
      %p172 = scmp.eq.s32.totalorder %s24, 1
      %p173 = scmp.ne.s32.totalorder %s168, %s170
      %p174 = scmp.eq.s32.totalorder %s24, 0
      %p175 = por %p173, %p174
      %p176 = scmp.ne.s32.totalorder %s168, %s170
      %p177 = scmp.eq.s32.totalorder %s29, 1
      %p178 = por %p176, %p177
      %p179 = scmp.ne.s32.totalorder %s170, %s171
      %p180 = scmp.eq.s32.totalorder %s29, 0
      %p181 = por %p179, %p180
      %p182 = scmp.ne.s32.totalorder %s170, %s171
      %p183 = scmp.eq.s32.totalorder %s30, 1
      %p184 = por %p182, %p183
      %p186 = scmp.ne.s32.totalorder %s171, %s185
      %p187 = scmp.eq.s32.totalorder %s30, 0
      %p188 = por %p186, %p187
      %s190 = sadd.s32 %s189, 1
      %p193 = scmp.eq.s32.totalorder %s24, 1
      %p194 = scmp.ne.s32.totalorder %s189, %s191
      %p195 = scmp.eq.s32.totalorder %s24, 0
      %p196 = por %p194, %p195
      %p197 = scmp.ne.s32.totalorder %s189, %s191
      %p198 = scmp.eq.s32.totalorder %s29, 1
      %p199 = por %p197, %p198
      %p200 = scmp.ne.s32.totalorder %s191, %s192
      %p201 = scmp.eq.s32.totalorder %s29, 0
      %p202 = por %p200, %p201
      %p203 = scmp.ne.s32.totalorder %s191, %s192
      %p204 = scmp.eq.s32.totalorder %s30, 1
      %p205 = por %p203, %p204
      %p207 = scmp.ne.s32.totalorder %s192, %s206
      %p208 = scmp.eq.s32.totalorder %s30, 0
      %p209 = por %p207, %p208
      %s210 = ssub.s32 %s24, %s31
      %p211 = scmp.eq.s32.totalorder %s210, 0
      %s213 = sadd.s32 %s212, 1
      %s214 = scalar_select %p211, %s212, %s213
      %p217 = pneg %p211
      %p218 = scmp.eq.s32.totalorder %s24, 1
      %p219 = por %p217, %p218
      %p220 = scmp.ne.s32.totalorder %s212, %s215
      %p221 = scmp.eq.s32.totalorder %s24, 0
      %p222 = por %p220, %p221
      %p223 = scmp.ne.s32.totalorder %s212, %s215
      %p224 = scmp.eq.s32.totalorder %s29, 1
      %p225 = por %p223, %p224
      %p226 = scmp.ne.s32.totalorder %s215, %s216
      %p227 = scmp.eq.s32.totalorder %s29, 0
      %p228 = por %p226, %p227
      %p229 = scmp.ne.s32.totalorder %s215, %s216
      %p230 = scmp.eq.s32.totalorder %s30, 1
      %p231 = por %p229, %p230
      %p233 = scmp.ne.s32.totalorder %s216, %s232
      %p234 = scmp.eq.s32.totalorder %s30, 0
      %p235 = por %p233, %p234
      %p236 = scmp.le.s32.totalorder 1, %s24
      %p237 = scmp.lt.s32.totalorder %s24, 3
      %p238 = pnand %p236, %p237
      %p239 = pneg %p238
      // Predicated region
      $region9: #{tpu_custom_call.1} parent=5 // pred_check
        _
      $region10: #{tpu_custom_call.1} parent=5 // pred_check_branch
        %241 = sbr.rel (%p238) target = $region12
      $region11: #{tpu_custom_call.1} parent=5 // pred_region
        %s242 = ssub.s32 %s24, 1
        // Predicated region
        $region13: #{tpu_custom_call.1} parent=11 // pred_check
          %p243 = pneg %p97
        $region14: #{tpu_custom_call.1} parent=11 // pred_check_branch
          %245 = sbr.rel (%p243) target = $region16
        $region15: #{tpu_custom_call.1} parent=11 // pred_region
          %247 = vsyncadd [#allocation6], 0
          %s248 = sshll.u32 %s2, 4
          %s249 = int_to_ptr.hbm [resolvable:$true] %s248
          %s250 = sshll.u32 [#allocation7], 4
          %s251 = int_to_ptr.vmem [resolvable:$true] %s250
          %256 = dma.hbm_to_vmem [thread:$0]  %s249, 1024, %s251, [#allocation6], 64, 64, 4
        $region16: #{tpu_custom_call.1} parent=11 // pred_fallthru
          _
        // Predicated region
        $region17: #{tpu_custom_call.1} parent=11 // pred_check
          %p257 = pneg %p118
        $region18: #{tpu_custom_call.1} parent=11 // pred_check_branch
          %259 = sbr.rel (%p257) target = $region20
        $region19: #{tpu_custom_call.1} parent=11 // pred_region
          _
        $region20: #{tpu_custom_call.1} parent=11 // pred_fallthru
          _
        // Predicated region
        $region21: #{tpu_custom_call.1} parent=11 // pred_check
          %p260 = pneg %p139
        $region22: #{tpu_custom_call.1} parent=11 // pred_check_branch
          %262 = sbr.rel (%p260) target = $region24
        $region23: #{tpu_custom_call.1} parent=11 // pred_region
          %264 = vsyncadd [#allocation9], 0
          %s265 = sshll.u32 %s4, 4
          %s266 = int_to_ptr.hbm [resolvable:$true] %s265
          %s267 = sshll.u32 [#allocation8], 4
          %s268 = int_to_ptr.vmem [resolvable:$true] %s267
          %273 = dma.hbm_to_vmem [thread:$0]  %s266, 2048, %s268, [#allocation9], 128, 128, 8
        $region24: #{tpu_custom_call.1} parent=11 // pred_fallthru
          _
        // Predicated region
        $region25: #{tpu_custom_call.1} parent=11 // pred_check
          %p274 = pneg %p160
        $region26: #{tpu_custom_call.1} parent=11 // pred_check_branch
          %276 = sbr.rel (%p274) target = $region28
        $region27: #{tpu_custom_call.1} parent=11 // pred_region
          _
        $region28: #{tpu_custom_call.1} parent=11 // pred_fallthru
          _
        // Predicated region
        $region29: #{tpu_custom_call.1} parent=11 // pred_check
          %p277 = pneg %p181
        $region30: #{tpu_custom_call.1} parent=11 // pred_check_branch
          %279 = sbr.rel (%p277) target = $region32
        $region31: #{tpu_custom_call.1} parent=11 // pred_region
          %281 = vsyncadd [#allocation9], 0
          %s282 = sshll.u32 %s6, 4
          %s283 = int_to_ptr.hbm [resolvable:$true] %s282
          %s284 = sshll.u32 [#allocation10], 4
          %s285 = int_to_ptr.vmem [resolvable:$true] %s284
          %290 = dma.hbm_to_vmem [thread:$0]  %s283, 1024, %s285, [#allocation9], 64, 64, 4
        $region32: #{tpu_custom_call.1} parent=11 // pred_fallthru
          _
        // Predicated region
        $region33: #{tpu_custom_call.1} parent=11 // pred_check
          %p291 = pneg %p202
        $region34: #{tpu_custom_call.1} parent=11 // pred_check_branch
          %293 = sbr.rel (%p291) target = $region36
        $region35: #{tpu_custom_call.1} parent=11 // pred_region
          _
        $region36: #{tpu_custom_call.1} parent=11 // pred_fallthru
          _
      $region12: #{tpu_custom_call.1} parent=5 // pred_fallthru
        _
      %p294 = scmp.lt.s32.totalorder %s24, 2
      // Predicated region
      $region37: #{tpu_custom_call.1} parent=5 // pred_check
        %p295 = pneg %p294
      $region38: #{tpu_custom_call.1} parent=5 // pred_check_branch
        %297 = sbr.rel (%p295) target = $region40
      $region39: #{tpu_custom_call.1} parent=5 // pred_region
        // Predicated region
        $region41: #{tpu_custom_call.1} parent=39 // pred_check
          %p298 = pneg %p44
        $region42: #{tpu_custom_call.1} parent=39 // pred_check_branch
          %300 = sbr.rel (%p298) target = $region44
        $region43: #{tpu_custom_call.1} parent=39 // pred_region
          %s301 = sand.u32 %s34, 1
          %s302 = scalar_lea.sflag [#allocation3], %s301
          %s303 = sand.u32 %s34, 1
          %s304 = smul.addr %s303, 8
          %s305 = scalar_lea.vmem [#allocation2], %s304
          %307 = vsyncadd %s302, 0
          %s308 = smul.addr %s24, 8
          %s309 = scalar_lea.hbm %s0, %s308
          %s311 = sshll.u32 %s309, 4
          %s312 = int_to_ptr.hbm [resolvable:$true] %s311
          %s313 = sshll.u32 %s305, 4
          %s314 = int_to_ptr.vmem [resolvable:$true] %s313
          %316 = dma.hbm_to_vmem [thread:$0]  %s312, 128, %s314, %s302
        $region44: #{tpu_custom_call.1} parent=39 // pred_fallthru
          _
        // Predicated region
        $region45: #{tpu_custom_call.1} parent=39 // pred_check
          %p317 = pneg %p70
        $region46: #{tpu_custom_call.1} parent=39 // pred_check_branch
          %319 = sbr.rel (%p317) target = $region48
        $region47: #{tpu_custom_call.1} parent=39 // pred_region
          %s320 = sand.u32 %s24, 1
          %s321 = scalar_lea.sflag [#allocation6], %s320
          %s322 = sand.u32 %s60, 1
          %s323 = smul.addr %s322, 8
          %s324 = scalar_lea.vmem [#allocation5], %s323
          %326 = vsyncadd %s321, 0
          %s327 = smul.addr %s24, 8
          %s328 = scalar_lea.hbm %s1, %s327
          %s330 = sshll.u32 %s328, 4
          %s331 = int_to_ptr.hbm [resolvable:$true] %s330
          %s332 = sshll.u32 %s324, 4
          %s333 = int_to_ptr.vmem [resolvable:$true] %s332
          %335 = dma.hbm_to_vmem [thread:$0]  %s331, 128, %s333, %s321
        $region48: #{tpu_custom_call.1} parent=39 // pred_fallthru
          _
      $region40: #{tpu_custom_call.1} parent=5 // pred_fallthru
        _
      %p336 = scmp.le.s32.totalorder 1, %s24
      %p337 = scmp.lt.s32.totalorder %s24, 3
      %p338 = pnand %p336, %p337
      %p339 = pneg %p338
      // Predicated region
      $region49: #{tpu_custom_call.1} parent=5 // pred_check
        _
      $region50: #{tpu_custom_call.1} parent=5 // pred_check_branch
        %341 = sbr.rel (%p338) target = $region52
      $region51: #{tpu_custom_call.1} parent=5 // pred_region
        %s342 = ssub.s32 %s24, 1
        %s343 = sand.u32 %s37, 1
        %s344 = scalar_lea.sflag [#allocation3], %s343
        %s345 = sand.u32 %s37, 1
        %s346 = smul.addr %s345, 8
        %s347 = scalar_lea.vmem [#allocation2], %s346
        // Predicated region
        $region53: #{tpu_custom_call.1} parent=51 // pred_check
          %p348 = pneg %p50
        $region54: #{tpu_custom_call.1} parent=51 // pred_check_branch
          %350 = sbr.rel (%p348) target = $region56
        $region55: #{tpu_custom_call.1} parent=51 // pred_region
          %352 = dma.done %s344, 128
        $region56: #{tpu_custom_call.1} parent=51 // pred_fallthru
          _
        %s353 = sand.u32 %s29, 1
        %s354 = scalar_lea.sflag [#allocation6], %s353
        %s355 = sand.u32 %s63, 1
        %s356 = smul.addr %s355, 8
        %s357 = scalar_lea.vmem [#allocation5], %s356
        // Predicated region
        $region57: #{tpu_custom_call.1} parent=51 // pred_check
          %p358 = pneg %p76
        $region58: #{tpu_custom_call.1} parent=51 // pred_check_branch
          %360 = sbr.rel (%p358) target = $region60
        $region59: #{tpu_custom_call.1} parent=51 // pred_region
          %362 = dma.done %s354, 128
        $region60: #{tpu_custom_call.1} parent=51 // pred_fallthru
          _
        // Predicated region
        $region61: #{tpu_custom_call.1} parent=51 // pred_check
          %p363 = pneg %p97
        $region62: #{tpu_custom_call.1} parent=51 // pred_check_branch
          %365 = sbr.rel (%p363) target = $region64
        $region63: #{tpu_custom_call.1} parent=51 // pred_region
          %367 = dma.done [#allocation6], 1024
        $region64: #{tpu_custom_call.1} parent=51 // pred_fallthru
          _
        // Predicated region
        $region65: #{tpu_custom_call.1} parent=51 // pred_check
          %p368 = pneg %p139
        $region66: #{tpu_custom_call.1} parent=51 // pred_check_branch
          %370 = sbr.rel (%p368) target = $region68
        $region67: #{tpu_custom_call.1} parent=51 // pred_region
          %372 = dma.done [#allocation9], 2048
        $region68: #{tpu_custom_call.1} parent=51 // pred_fallthru
          _
        // Predicated region
        $region69: #{tpu_custom_call.1} parent=51 // pred_check
          %p373 = pneg %p181
        $region70: #{tpu_custom_call.1} parent=51 // pred_check_branch
          %375 = sbr.rel (%p373) target = $region72
        $region71: #{tpu_custom_call.1} parent=51 // pred_region
          %377 = dma.done [#allocation9], 1024
        $region72: #{tpu_custom_call.1} parent=51 // pred_fallthru
          _
        %s378 = sand.u32 %s37, 1
        %s379 = scalar_lea.sflag [#allocation3], %s378
        %s380 = sand.u32 %s37, 1
        %s381 = smul.addr %s380, 8
        %s382 = scalar_lea.vmem [#allocation2], %s381
        %p383 = pneg %p50
        %p384 = pneg %p47
        %s385 = sand.u32 %s29, 1
        %s386 = scalar_lea.sflag [#allocation6], %s385
        %s387 = sand.u32 %s63, 1
        %s388 = smul.addr %s387, 8
        %s389 = scalar_lea.vmem [#allocation5], %s388
        %p390 = pneg %p76
        %p391 = pneg %p73
        %p392 = pneg %p97
        %p393 = pneg %p94
        %p394 = pneg %p118
        %p395 = pneg %p115
        %p396 = pneg %p139
        %p397 = pneg %p136
        %p398 = pneg %p160
        %p399 = pneg %p157
        %p400 = pneg %p181
        %p401 = pneg %p178
        %p402 = pneg %p202
        %p403 = pneg %p199
        %p404 = pneg %p228
        %p405 = pneg %p225
        %s406 = sand.u32 %s215, 1
        %s407 = scalar_lea.sflag [#allocation4], %s406
        %s408 = sand.u32 %s215, 1
        %s409 = smul.addr %s408, 8
        %s410 = scalar_lea.vmem [#allocation11], %s409
        %v412 = vld [vmem:[%s347] sm:$0xff]
        %v413 = vld [vmem:[%s357] sm:$0xff]
        %v414 = vpack.c.bf16 %v412, %v412
        %v415 = vld [vmem:[#allocation7] sm:$0xf]
        %v416 = vld [vmem:[#allocation7 + $0x4] sm:$0xf]
        %v417 = vld [vmem:[#allocation7 + $0x8] sm:$0xf]
        %v418 = vld [vmem:[#allocation7 + $0xc] sm:$0xf]
        %v419 = vld [vmem:[#allocation7 + $0x10] sm:$0xf]
        %v420 = vld [vmem:[#allocation7 + $0x14] sm:$0xf]
        %v421 = vld [vmem:[#allocation7 + $0x18] sm:$0xf]
        %v422 = vld [vmem:[#allocation7 + $0x1c] sm:$0xf]
        %v423 = vld [vmem:[#allocation7 + $0x20] sm:$0xf]
        %v424 = vld [vmem:[#allocation7 + $0x24] sm:$0xf]
        %v425 = vld [vmem:[#allocation7 + $0x28] sm:$0xf]
        %v426 = vld [vmem:[#allocation7 + $0x2c] sm:$0xf]
        %v427 = vld [vmem:[#allocation7 + $0x30] sm:$0xf]
        %v428 = vld [vmem:[#allocation7 + $0x34] sm:$0xf]
        %v429 = vld [vmem:[#allocation7 + $0x38] sm:$0xf]
        %v430 = vld [vmem:[#allocation7 + $0x3c] sm:$0xf]
        %v431 = vld [vmem:[%s3] sm:$0x1]
        %v433 = vperm.slane %v431, 0
        %v451 = vunpack.c.l.b16 %v415
        %v452 = vunpack.c.l.b16 %v416
        %v453 = vunpack.c.l.b16 %v417
        %v454 = vunpack.c.l.b16 %v418
        %v455 = vunpack.c.l.b16 %v419
        %v456 = vunpack.c.l.b16 %v420
        %v457 = vunpack.c.l.b16 %v421
        %v458 = vunpack.c.l.b16 %v422
        %v459 = vunpack.c.l.b16 %v423
        %v460 = vunpack.c.l.b16 %v424
        %v461 = vunpack.c.l.b16 %v425
        %v462 = vunpack.c.l.b16 %v426
        %v463 = vunpack.c.l.b16 %v427
        %v464 = vunpack.c.l.b16 %v428
        %v465 = vunpack.c.l.b16 %v429
        %v466 = vunpack.c.l.b16 %v430
        %v467 = vpack.c.b16 %v452, %v451
        %v468 = vpack.c.b16 %v454, %v453
        %v469 = vpack.c.b16 %v456, %v455
        %v470 = vpack.c.b16 %v458, %v457
        %v471 = vpack.c.b16 %v460, %v459
        %v472 = vpack.c.b16 %v462, %v461
        %v473 = vpack.c.b16 %v464, %v463
        %v474 = vpack.c.b16 %v466, %v465
        %483 = vmatpush.bf16.msra.mxu0 %v474
        %484 = vmatpush.bf16.msra.mxu0 %v473
        %485 = vmatpush.bf16.msra.mxu0 %v472
        %486 = vmatpush.bf16.msra.mxu0 %v471
        %487 = vmatpush.bf16.msra.mxu0 %v470
        %488 = vmatpush.bf16.msra.mxu0 %v469
        %489 = vmatpush.bf16.msra.mxu0 %v468
        %490 = vmatpush.bf16.msra.mxu0 %v467
        %491 = vmatmul.bf16.gmra.mxu0 %v414
        %v492 = vpop.f32.mrf.mxu0
        %v493 = vadd.f32 %v433, %v492
        %v494 = vpop.f32.mrf.mxu0
        %495 = vdwg.mxu0
        %v496 = vpack.c.bf16 %v413, %v413
        %v497 = vld [vmem:[#allocation8] sm:$0xff]
        %v498 = vld [vmem:[#allocation8 + $0x8] sm:$0xff]
        %v499 = vld [vmem:[#allocation8 + $0x10] sm:$0xff]
        %v500 = vld [vmem:[#allocation8 + $0x18] sm:$0xff]
        %v501 = vld [vmem:[#allocation8 + $0x20] sm:$0xff]
        %v502 = vld [vmem:[#allocation8 + $0x28] sm:$0xff]
        %v503 = vld [vmem:[#allocation8 + $0x30] sm:$0xff]
        %v504 = vld [vmem:[#allocation8 + $0x38] sm:$0xff]
        %v505 = vld [vmem:[#allocation8 + $0x40] sm:$0xff]
        %v506 = vld [vmem:[#allocation8 + $0x48] sm:$0xff]
        %v507 = vld [vmem:[#allocation8 + $0x50] sm:$0xff]
        %v508 = vld [vmem:[#allocation8 + $0x58] sm:$0xff]
        %v509 = vld [vmem:[#allocation8 + $0x60] sm:$0xff]
        %v510 = vld [vmem:[#allocation8 + $0x68] sm:$0xff]
        %v511 = vld [vmem:[#allocation8 + $0x70] sm:$0xff]
        %v512 = vld [vmem:[#allocation8 + $0x78] sm:$0xff]
        %v513 = vld [vmem:[%s5] sm:$0x3]
        %v515 = vperm.slane %v513, 0
        %v516 = vperm.slane %v513, 1
        %v535 = vunpack.c.l.b16 %v497
        %v536 = vunpack.c.h.b16 %v497
        %v537 = vunpack.c.l.b16 %v498
        %v538 = vunpack.c.h.b16 %v498
        %v539 = vunpack.c.l.b16 %v499
        %v540 = vunpack.c.h.b16 %v499
        %v541 = vunpack.c.l.b16 %v500
        %v542 = vunpack.c.h.b16 %v500
        %v543 = vunpack.c.l.b16 %v501
        %v544 = vunpack.c.h.b16 %v501
        %v545 = vunpack.c.l.b16 %v502
        %v546 = vunpack.c.h.b16 %v502
        %v547 = vunpack.c.l.b16 %v503
        %v548 = vunpack.c.h.b16 %v503
        %v549 = vunpack.c.l.b16 %v504
        %v550 = vunpack.c.h.b16 %v504
        %v551 = vunpack.c.l.b16 %v505
        %v552 = vunpack.c.h.b16 %v505
        %v553 = vunpack.c.l.b16 %v506
        %v554 = vunpack.c.h.b16 %v506
        %v555 = vunpack.c.l.b16 %v507
        %v556 = vunpack.c.h.b16 %v507
        %v557 = vunpack.c.l.b16 %v508
        %v558 = vunpack.c.h.b16 %v508
        %v559 = vunpack.c.l.b16 %v509
        %v560 = vunpack.c.h.b16 %v509
        %v561 = vunpack.c.l.b16 %v510
        %v562 = vunpack.c.h.b16 %v510
        %v563 = vunpack.c.l.b16 %v511
        %v564 = vunpack.c.h.b16 %v511
        %v565 = vunpack.c.l.b16 %v512
        %v566 = vunpack.c.h.b16 %v512
        %v567 = vpack.c.b16 %v537, %v535
        %v568 = vpack.c.b16 %v538, %v536
        %v569 = vpack.c.b16 %v541, %v539
        %v570 = vpack.c.b16 %v542, %v540
        %v571 = vpack.c.b16 %v545, %v543
        %v572 = vpack.c.b16 %v546, %v544
        %v573 = vpack.c.b16 %v549, %v547
        %v574 = vpack.c.b16 %v550, %v548
        %v575 = vpack.c.b16 %v553, %v551
        %v576 = vpack.c.b16 %v554, %v552
        %v577 = vpack.c.b16 %v557, %v555
        %v578 = vpack.c.b16 %v558, %v556
        %v579 = vpack.c.b16 %v561, %v559
        %v580 = vpack.c.b16 %v562, %v560
        %v581 = vpack.c.b16 %v565, %v563
        %v582 = vpack.c.b16 %v566, %v564
        %599 = vmatpush.bf16.msra.mxu0 %v581
        %600 = vmatpush.bf16.msra.mxu0 %v579
        %601 = vmatpush.bf16.msra.mxu0 %v577
        %602 = vmatpush.bf16.msra.mxu0 %v575
        %603 = vmatpush.bf16.msra.mxu0 %v573
        %604 = vmatpush.bf16.msra.mxu0 %v571
        %605 = vmatpush.bf16.msra.mxu0 %v569
        %606 = vmatpush.bf16.msra.mxu0 %v567
        %607 = vmatmul.bf16.gmra.mxu0 %v496
        %v608 = vpop.f32.mrf.mxu0
        %v609 = vadd.f32 %v515, %v608
        %v610 = vpop.f32.mrf.mxu0
        %611 = vdwg.mxu0
        %612 = vmatpush.bf16.msra.mxu0 %v582
        %613 = vmatpush.bf16.msra.mxu0 %v580
        %614 = vmatpush.bf16.msra.mxu0 %v578
        %615 = vmatpush.bf16.msra.mxu0 %v576
        %616 = vmatpush.bf16.msra.mxu0 %v574
        %617 = vmatpush.bf16.msra.mxu0 %v572
        %618 = vmatpush.bf16.msra.mxu0 %v570
        %619 = vmatpush.bf16.msra.mxu0 %v568
        %620 = vmatmul.bf16.gmra.mxu0 %v496
        %v621 = vpop.f32.mrf.mxu0
        %v622 = vadd.f32 %v516, %v621
        %v623 = vpop.f32.mrf.mxu0
        %624 = vdwg.mxu0
        %v625 = vpack.c.bf16 %v493, %v493
        %v626 = vpack.c.bf16 %v609, %v609
        %v627 = vpack.c.bf16 %v622, %v622
        %vm628 = vcmask 261120
        %v630 = vsel %vm628, %v625, 0
        %v633 = vsel %vm628, %v626, 0
        %635 = vmatpush.bf16.xpose.msra.mxu0 0
        %636 = vmatpush.bf16.xpose.msra.mxu0 0
        %637 = vmatpush.bf16.xpose.msra.mxu0 0
        %638 = vmatpush.bf16.xpose.msra.mxu0 0
        %639 = vmatpush.bf16.xpose.msra.mxu0 0
        %640 = vmatpush.bf16.xpose.msra.mxu0 0
        %641 = vmatpush.bf16.xpose.msra.mxu0 0
        %642 = vmatpush.bf16.xpose.msra.mxu0 %v633
        %643 = vmatmul.bf16.gmra.mxu0 %v630
        %v644 = vpop.f32.mrf.mxu0
        %v645 = vadd.f32 0.0, %v644
        %v646 = vpop.f32.mrf.mxu0
        %647 = vdwg.mxu0
        %v648 = vmul.f32 %v645, 0.17677669
        %vm649 = vcmask 64512
        %v650 = vsel %vm649, %v648, -inf
        %651 = vmax.xlane.f32.xlu0 %v650
        %v652 = vpop.xlane.xlu0 %651
        %v653 = vsub.f32 %v648, %v652
        %v654 = vmul.f32 %v653, 1.442695
        %v655 = vpow.pop %v654
        %v656 = vsel %vm649, %v655, 0.0
        %657 = vadd.xlane.f32.xlu0 %v656
        %v658 = vpop.xlane.xlu0 %657
        %v659 = vrcp.pop %v658
        %v660 = vmul.f32 %v655, %v659
        %v661 = vpack.c.bf16 %v660, %v660
        %v663 = vsel %vm649, %v661, 0
        %vm665 = vcmask 1043456
        %v667 = vsel %vm665, %v627, 0
        %669 = vmatpush.bf16.msra.mxu0 0
        %670 = vmatpush.bf16.msra.mxu0 0
        %671 = vmatpush.bf16.msra.mxu0 0
        %672 = vmatpush.bf16.msra.mxu0 0
        %673 = vmatpush.bf16.msra.mxu0 0
        %674 = vmatpush.bf16.msra.mxu0 0
        %675 = vmatpush.bf16.msra.mxu0 0
        %676 = vmatpush.bf16.msra.mxu0 %v667
        %677 = vmatmul.bf16.gmra.mxu0 %v663
        %v678 = vpop.f32.mrf.mxu0
        %v679 = vadd.f32 0.0, %v678
        %v680 = vpop.f32.mrf.mxu0
        %681 = vdwg.mxu0
        %683 = vrot.lane.b32.xlu0 %v625, 96
        %v684 = vpop.permute.xlu0 %683
        %686 = vrot.lane.b32.xlu0 %v626, 96
        %v687 = vpop.permute.xlu0 %686
        %v689 = vsel %vm628, %v684, 0
        %v692 = vsel %vm628, %v687, 0
        %694 = vmatpush.bf16.xpose.msra.mxu0 0
        %695 = vmatpush.bf16.xpose.msra.mxu0 0
        %696 = vmatpush.bf16.xpose.msra.mxu0 0
        %697 = vmatpush.bf16.xpose.msra.mxu0 0
        %698 = vmatpush.bf16.xpose.msra.mxu0 0
        %699 = vmatpush.bf16.xpose.msra.mxu0 0
        %700 = vmatpush.bf16.xpose.msra.mxu0 0
        %701 = vmatpush.bf16.xpose.msra.mxu0 %v692
        %702 = vmatmul.bf16.gmra.mxu0 %v689
        %v703 = vpop.f32.mrf.mxu0
        %v704 = vadd.f32 0.0, %v703
        %v705 = vpop.f32.mrf.mxu0
        %706 = vdwg.mxu0
        %v707 = vmul.f32 %v704, 0.17677669
        %v708 = vsel %vm649, %v707, -inf
        %709 = vmax.xlane.f32.xlu0 %v708
        %v710 = vpop.xlane.xlu0 %709
        %v711 = vsub.f32 %v707, %v710
        %v712 = vmul.f32 %v711, 1.442695
        %v713 = vpow.pop %v712
        %v714 = vsel %vm649, %v713, 0.0
        %715 = vadd.xlane.f32.xlu0 %v714
        %v716 = vpop.xlane.xlu0 %715
        %v717 = vrcp.pop %v716
        %v718 = vmul.f32 %v713, %v717
        %v719 = vpack.c.bf16 %v718, %v718
        %721 = vrot.lane.b32.xlu0 %v627, 96
        %v722 = vpop.permute.xlu0 %721
        %v724 = vsel %vm649, %v719, 0
        %v727 = vsel %vm665, %v722, 0
        %729 = vmatpush.bf16.msra.mxu0 0
        %730 = vmatpush.bf16.msra.mxu0 0
        %731 = vmatpush.bf16.msra.mxu0 0
        %732 = vmatpush.bf16.msra.mxu0 0
        %733 = vmatpush.bf16.msra.mxu0 0
        %734 = vmatpush.bf16.msra.mxu0 0
        %735 = vmatpush.bf16.msra.mxu0 0
        %736 = vmatpush.bf16.msra.mxu0 %v727
        %737 = vmatmul.bf16.gmra.mxu0 %v724
        %v738 = vpop.f32.mrf.mxu0
        %v739 = vadd.f32 0.0, %v738
        %v740 = vpop.f32.mrf.mxu0
        %741 = vdwg.mxu0
        %742 = vrot.lane.b32.xlu0 %v625, 64
        %v743 = vpop.permute.xlu0 %742
        %744 = vrot.lane.b32.xlu0 %v626, 64
        %v745 = vpop.permute.xlu0 %744
        %v747 = vsel %vm628, %v743, 0
        %v750 = vsel %vm628, %v745, 0
        %752 = vmatpush.bf16.xpose.msra.mxu0 0
        %753 = vmatpush.bf16.xpose.msra.mxu0 0
        %754 = vmatpush.bf16.xpose.msra.mxu0 0
        %755 = vmatpush.bf16.xpose.msra.mxu0 0
        %756 = vmatpush.bf16.xpose.msra.mxu0 0
        %757 = vmatpush.bf16.xpose.msra.mxu0 0
        %758 = vmatpush.bf16.xpose.msra.mxu0 0
        %759 = vmatpush.bf16.xpose.msra.mxu0 %v750
        %760 = vmatmul.bf16.gmra.mxu0 %v747
        %v761 = vpop.f32.mrf.mxu0
        %v762 = vadd.f32 0.0, %v761
        %v763 = vpop.f32.mrf.mxu0
        %764 = vdwg.mxu0
        %v765 = vmul.f32 %v762, 0.17677669
        %v766 = vsel %vm649, %v765, -inf
        %767 = vmax.xlane.f32.xlu0 %v766
        %v768 = vpop.xlane.xlu0 %767
        %v769 = vsub.f32 %v765, %v768
        %v770 = vmul.f32 %v769, 1.442695
        %v771 = vpow.pop %v770
        %v772 = vsel %vm649, %v771, 0.0
        %773 = vadd.xlane.f32.xlu0 %v772
        %v774 = vpop.xlane.xlu0 %773
        %v775 = vrcp.pop %v774
        %v776 = vmul.f32 %v771, %v775
        %v777 = vpack.c.bf16 %v776, %v776
        %778 = vrot.lane.b32.xlu0 %v627, 64
        %v779 = vpop.permute.xlu0 %778
        %v781 = vsel %vm649, %v777, 0
        %v784 = vsel %vm665, %v779, 0
        %786 = vmatpush.bf16.msra.mxu0 0
        %787 = vmatpush.bf16.msra.mxu0 0
        %788 = vmatpush.bf16.msra.mxu0 0
        %789 = vmatpush.bf16.msra.mxu0 0
        %790 = vmatpush.bf16.msra.mxu0 0
        %791 = vmatpush.bf16.msra.mxu0 0
        %792 = vmatpush.bf16.msra.mxu0 0
        %793 = vmatpush.bf16.msra.mxu0 %v784
        %794 = vmatmul.bf16.gmra.mxu0 %v781
        %v795 = vpop.f32.mrf.mxu0
        %v796 = vadd.f32 0.0, %v795
        %v797 = vpop.f32.mrf.mxu0
        %798 = vdwg.mxu0
        %799 = vrot.lane.b32.xlu0 %v625, 32
        %v800 = vpop.permute.xlu0 %799
        %801 = vrot.lane.b32.xlu0 %v626, 32
        %v802 = vpop.permute.xlu0 %801
        %v804 = vsel %vm628, %v800, 0
        %v807 = vsel %vm628, %v802, 0
        %809 = vmatpush.bf16.xpose.msra.mxu0 0
        %810 = vmatpush.bf16.xpose.msra.mxu0 0
        %811 = vmatpush.bf16.xpose.msra.mxu0 0
        %812 = vmatpush.bf16.xpose.msra.mxu0 0
        %813 = vmatpush.bf16.xpose.msra.mxu0 0
        %814 = vmatpush.bf16.xpose.msra.mxu0 0
        %815 = vmatpush.bf16.xpose.msra.mxu0 0
        %816 = vmatpush.bf16.xpose.msra.mxu0 %v807
        %817 = vmatmul.bf16.gmra.mxu0 %v804
        %v818 = vpop.f32.mrf.mxu0
        %v819 = vadd.f32 0.0, %v818
        %v820 = vpop.f32.mrf.mxu0
        %821 = vdwg.mxu0
        %v822 = vmul.f32 %v819, 0.17677669
        %v823 = vsel %vm649, %v822, -inf
        %824 = vmax.xlane.f32.xlu0 %v823
        %v825 = vpop.xlane.xlu0 %824
        %v826 = vsub.f32 %v822, %v825
        %v827 = vmul.f32 %v826, 1.442695
        %v828 = vpow.pop %v827
        %v829 = vsel %vm649, %v828, 0.0
        %830 = vadd.xlane.f32.xlu0 %v829
        %v831 = vpop.xlane.xlu0 %830
        %v832 = vrcp.pop %v831
        %v833 = vmul.f32 %v828, %v832
        %v834 = vpack.c.bf16 %v833, %v833
        %835 = vrot.lane.b32.xlu0 %v627, 32
        %v836 = vpop.permute.xlu0 %835
        %v838 = vsel %vm649, %v834, 0
        %v841 = vsel %vm665, %v836, 0
        %843 = vmatpush.bf16.msra.mxu0 0
        %844 = vmatpush.bf16.msra.mxu0 0
        %845 = vmatpush.bf16.msra.mxu0 0
        %846 = vmatpush.bf16.msra.mxu0 0
        %847 = vmatpush.bf16.msra.mxu0 0
        %848 = vmatpush.bf16.msra.mxu0 0
        %849 = vmatpush.bf16.msra.mxu0 0
        %850 = vmatpush.bf16.msra.mxu0 %v841
        %851 = vmatmul.bf16.gmra.mxu0 %v838
        %v852 = vpop.f32.mrf.mxu0
        %v853 = vadd.f32 0.0, %v852
        %v854 = vpop.f32.mrf.mxu0
        %855 = vdwg.mxu0
        %857 = vrot.lane.b32.xlu0 %v739, 32
        %v858 = vpop.permute.xlu0 %857
        %861 = vrot.lane.b32.xlu0 %v796, 64
        %v862 = vpop.permute.xlu0 %861
        %865 = vrot.lane.b32.xlu0 %v853, 96
        %v866 = vpop.permute.xlu0 %865
        %v868 = vsel %vm628, %v679, %v858
        %vm869 = vcmask 523264
        %v870 = vsel %vm869, %v868, %v862
        %vm871 = vcmask 785408
        %v872 = vsel %vm871, %v870, %v866
        %v873 = vpack.c.bf16 %v872, %v872
        %v874 = vld [vmem:[#allocation10] sm:$0xf]
        %v875 = vld [vmem:[#allocation10 + $0x4] sm:$0xf]
        %v876 = vld [vmem:[#allocation10 + $0x8] sm:$0xf]
        %v877 = vld [vmem:[#allocation10 + $0xc] sm:$0xf]
        %v878 = vld [vmem:[#allocation10 + $0x10] sm:$0xf]
        %v879 = vld [vmem:[#allocation10 + $0x14] sm:$0xf]
        %v880 = vld [vmem:[#allocation10 + $0x18] sm:$0xf]
        %v881 = vld [vmem:[#allocation10 + $0x1c] sm:$0xf]
        %v882 = vld [vmem:[#allocation10 + $0x20] sm:$0xf]
        %v883 = vld [vmem:[#allocation10 + $0x24] sm:$0xf]
        %v884 = vld [vmem:[#allocation10 + $0x28] sm:$0xf]
        %v885 = vld [vmem:[#allocation10 + $0x2c] sm:$0xf]
        %v886 = vld [vmem:[#allocation10 + $0x30] sm:$0xf]
        %v887 = vld [vmem:[#allocation10 + $0x34] sm:$0xf]
        %v888 = vld [vmem:[#allocation10 + $0x38] sm:$0xf]
        %v889 = vld [vmem:[#allocation10 + $0x3c] sm:$0xf]
        %v890 = vld [vmem:[%s7] sm:$0x1]
        %v892 = vperm.slane %v890, 0
        %v910 = vunpack.c.l.b16 %v874
        %v911 = vunpack.c.l.b16 %v875
        %v912 = vunpack.c.l.b16 %v876
        %v913 = vunpack.c.l.b16 %v877
        %v914 = vunpack.c.l.b16 %v878
        %v915 = vunpack.c.l.b16 %v879
        %v916 = vunpack.c.l.b16 %v880
        %v917 = vunpack.c.l.b16 %v881
        %v918 = vunpack.c.l.b16 %v882
        %v919 = vunpack.c.l.b16 %v883
        %v920 = vunpack.c.l.b16 %v884
        %v921 = vunpack.c.l.b16 %v885
        %v922 = vunpack.c.l.b16 %v886
        %v923 = vunpack.c.l.b16 %v887
        %v924 = vunpack.c.l.b16 %v888
        %v925 = vunpack.c.l.b16 %v889
        %v926 = vpack.c.b16 %v911, %v910
        %v927 = vpack.c.b16 %v913, %v912
        %v928 = vpack.c.b16 %v915, %v914
        %v929 = vpack.c.b16 %v917, %v916
        %v930 = vpack.c.b16 %v919, %v918
        %v931 = vpack.c.b16 %v921, %v920
        %v932 = vpack.c.b16 %v923, %v922
        %v933 = vpack.c.b16 %v925, %v924
        %942 = vmatpush.bf16.msra.mxu0 %v933
        %943 = vmatpush.bf16.msra.mxu0 %v932
        %944 = vmatpush.bf16.msra.mxu0 %v931
        %945 = vmatpush.bf16.msra.mxu0 %v930
        %946 = vmatpush.bf16.msra.mxu0 %v929
        %947 = vmatpush.bf16.msra.mxu0 %v928
        %948 = vmatpush.bf16.msra.mxu0 %v927
        %949 = vmatpush.bf16.msra.mxu0 %v926
        %950 = vmatmul.bf16.gmra.mxu0 %v873
        %v951 = vpop.f32.mrf.mxu0
        %v952 = vadd.f32 %v892, %v951
        %v953 = vpop.f32.mrf.mxu0
        %954 = vdwg.mxu0
        %955 = vst [vmem:[%s410] sm:$0xff] %v952
        %s956 = sand.u32 %s215, 1
        %s957 = scalar_lea.sflag [#allocation4], %s956
        %s958 = sand.u32 %s215, 1
        %s959 = smul.addr %s958, 8
        %s960 = scalar_lea.vmem [#allocation11], %s959
        // Predicated region
        $region73: #{tpu_custom_call.1} parent=51 // pred_check
          %p961 = pneg %p225
        $region74: #{tpu_custom_call.1} parent=51 // pred_check_branch
          %963 = sbr.rel (%p961) target = $region76
        $region75: #{tpu_custom_call.1} parent=51 // pred_region
          %965 = vsyncadd %s957, 0
          %s966 = smul.addr %s29, 8
          %s967 = scalar_lea.hbm %s8, %s966
          %s969 = sshll.u32 %s960, 4
          %s970 = int_to_ptr.vmem [resolvable:$true] %s969
          %s971 = sshll.u32 %s967, 4
          %s972 = int_to_ptr.hbm [resolvable:$true] %s971
          %974 = dma.vmem_to_hbm [thread:$0]  %s970, 128, %s972, %s957
        $region76: #{tpu_custom_call.1} parent=51 // pred_fallthru
          _
      $region52: #{tpu_custom_call.1} parent=5 // pred_fallthru
        _
      %p975 = scmp.le.s32.totalorder 2, %s24
      // Predicated region
      $region77: #{tpu_custom_call.1} parent=5 // pred_check
        %p976 = pneg %p975
      $region78: #{tpu_custom_call.1} parent=5 // pred_check_branch
        %978 = sbr.rel (%p976) target = $region80
      $region79: #{tpu_custom_call.1} parent=5 // pred_region
        %s979 = ssub.s32 %s24, 2
        // Predicated region
        $region81: #{tpu_custom_call.1} parent=79 // pred_check
          %p980 = pneg %p231
        $region82: #{tpu_custom_call.1} parent=79 // pred_check_branch
          %982 = sbr.rel (%p980) target = $region84
        $region83: #{tpu_custom_call.1} parent=79 // pred_region
          %s983 = sand.u32 %s216, 1
          %s984 = scalar_lea.sflag [#allocation4], %s983
          %s985 = sand.u32 %s216, 1
          %s986 = smul.addr %s985, 8
          %s987 = scalar_lea.vmem [#allocation11], %s986
          %989 = dma.done %s984, 128
        $region84: #{tpu_custom_call.1} parent=79 // pred_fallthru
          _
      $region80: #{tpu_custom_call.1} parent=5 // pred_fallthru
        _
    $region6: #{tpu_custom_call.1} parent=1 // loop_footer
      %s28 = sadd.s32 1, %s24
    $region7: #{tpu_custom_call.1} parent=1 // loop_footer_branch
      %23 = sbr.rel target = $region3
    $region8: #{tpu_custom_call.1} parent=1 // loop_exit
      _
    %990 = vsyncpa [#allocation3], 1
    %s991 = scalar_lea.sflag [#allocation3], 1
    %992 = vsyncpa %s991, 1
    %993 = vsyncpa [#allocation6], 1
    %s994 = scalar_lea.sflag [#allocation6], 1
    %995 = vsyncpa %s994, 1
    %996 = vsyncpa [#allocation9], 1
    %997 = vsyncpa [#allocation4], 1
    %s998 = scalar_lea.sflag [#allocation4], 1
    %999 = vsyncpa %s998, 1

</llo_original>
